<compile_context>
chip_gen: v7x
topology: tpu7x:2x2x1
jax: 0.10.0
libtpu: 0.0.40
codegen_flags: <defaults>
</compile_context>

<pallas_src>
import functools

import jax
import jax.numpy as jnp
from jax.experimental import pallas as pl
from jax.experimental.pallas import tpu as pltpu


def _round_up(x, m):
    return ((x + m - 1) // m) * m


def _vmem_limit_bytes():
    """~3/4 of physical VMEM: ~48 MiB on 64 MiB parts (v7x), 96 MiB on the
    128 MiB parts (v5e / v6e).  Falls back to 48 MiB if the query fails."""
    cap = 64 * 1024 * 1024
    try:
        cap = int(getattr(pltpu.get_tpu_info(), "vmem_capacity_bytes", cap))
    except Exception:
        pass
    return max(32 * 1024 * 1024, min(96 * 1024 * 1024, (cap * 3) // 4))


_VMEM_LIMIT = _vmem_limit_bytes()   # computed once, outside any trace


def _choose_tile_n(E_pad, max_tn=2048):
    """Largest 128-aligned divisor of E_pad that is <= max_tn (E_pad is a
    multiple of 128, so 128 always qualifies).  Single block for E<=2048."""
    if E_pad <= max_tn:
        return E_pad
    best = 128
    for cand in range(128, max_tn + 1, 128):
        if E_pad % cand == 0:
            best = cand
    return best


def _choose_tile_m(M, tile_m, max_tm):
    """Return (tm, M_pad).  Preference order:
       1. large tiles (amortize the ~0.35us fixed per-grid-step overhead),
       2. a 16-aligned divisor of M (no padded rows, no post-call slice copy),
       3. >=2 grid steps when there is enough work (v7x megacore split),
       all subject to the VMEM-derived cap `max_tm`."""
    tile_m = max(16, min(tile_m, max_tm) // 16 * 16)
    if M <= max(256, tile_m):
        tm = _round_up(M, 16)            # single tile; tiny pad at most
        return tm, tm
    hi = min(2 * tile_m, max_tm, M // 2)
    best = 0
    for cand in range(16, hi + 1, 16):
        if M % cand == 0:
            best = cand                   # largest 16-aligned divisor <= hi
    if best >= max(128, tile_m // 4):
        return best, M                    # exact tiling: no pad, no slice
    return tile_m, _round_up(M, tile_m)   # fall back to padding M


def _patch_embed_kernel(patches_ref, w_ref, b_ref, o_ref):
    # patches_ref: (tm, K_pad) compute dtype — streamed per M tile
    # w_ref      : (K_pad, tn) compute dtype — VMEM-resident across the M axis
    # b_ref      : (1, tn)     f32           — VMEM-resident
    # o_ref      : (tm, tn)    out dtype
    acc = jnp.dot(patches_ref[...], w_ref[...],
                  preferred_element_type=jnp.float32)
    o_ref[...] = (acc + b_ref[...]).astype(o_ref.dtype)


def patch_embed(x, weight, bias, patch_size, *,
                compute_dtype=jnp.bfloat16, out_dtype=None, tile_m=512):
    """ViT patch embedding: Conv2d(kernel=P, stride=P) + flatten(2) + transpose(1,2).

    x      : (B, C, H, W)   NCHW, same layout as the PyTorch module
    weight : (E, C, P, P)   Conv2d weight
    bias   : (E,)           Conv2d bias
    returns: (B, n_patches, E) in `out_dtype` (default: x.dtype).
             Pass out_dtype=jnp.bfloat16 to halve output HBM traffic.
             Pass compute_dtype=jnp.float32 for closer parity with the f32 module.
    """
    B, C, H, W = x.shape
    E = weight.shape[0]
    P = patch_size
    gh, gw = H // P, W // P          # floor: matches Conv2d VALID / stride=P
    n_patches = gh * gw
    M = B * n_patches
    K = C * P * P

    out_dtype = x.dtype if out_dtype is None else jnp.dtype(out_dtype)
    cbytes = jnp.dtype(compute_dtype).itemsize
    obytes = jnp.dtype(out_dtype).itemsize

    # Lane-dense output stores (unmasked vst): pad E up to a multiple of 128.
    E_pad = _round_up(E, 128)
    # Unmasked lane loads + full MXU contraction passes: pad K to 128 when it
    # is unaligned (skip tiny K where zero columns would dominate the traffic).
    K_pad = _round_up(K, 128) if (K > 128 and K % 128) else K

    # N/E tiling: single resident weight block for common embed dims; split
    # only for very large E so big M tiles still fit v7x's 64 MiB VMEM.
    tn = _choose_tile_n(E_pad)
    n_n = E_pad // tn

    # M-tile cap from the VMEM budget: double-buffered patches + output blocks,
    # resident weight/bias, and an f32 accumulator temp.
    budget = int(_VMEM_LIMIT * 0.85) - 2 * K_pad * tn * cbytes - 2 * tn * 4
    per_row = 2 * K_pad * cbytes + 2 * tn * obytes + tn * 4
    max_tm = max(128, budget // per_row)
    tm, M_pad = _choose_tile_m(M, tile_m, max_tm)
    n_m = M_pad // tm

    # --- patchify (plain JAX glue; allow_input_fusion lets XLA pull it into
    # the kernel's input pipeline).  Cast to the compute dtype FIRST so that if
    # the transpose does materialize in HBM, the intermediate is half-width.
    xp = x.astype(compute_dtype).reshape(B, C, gh, P, gw, P)
    xp = jnp.transpose(xp, (0, 2, 4, 1, 3, 5))        # (B, gh, gw, C, P, P)
    patches = xp.reshape(M, K)                        # row order (c, ph, pw)
    if M_pad != M or K_pad != K:
        patches = jnp.pad(patches, ((0, M_pad - M), (0, K_pad - K)))

    # Conv weight (E, C, P, P) -> (K_pad, E_pad); rows match (c, ph, pw) order.
    w_mat = weight.reshape(E, K).T.astype(compute_dtype)
    b_mat = bias.reshape(1, E).astype(jnp.float32)
    if K_pad != K or E_pad != E:
        w_mat = jnp.pad(w_mat, ((0, K_pad - K), (0, E_pad - E)))
    if E_pad != E:
        b_mat = jnp.pad(b_mat, ((0, 0), (0, E_pad - E)))

    # N outer (weight read once overall), M inner (patches stream per N tile).
    grid = (n_n, n_m)

    cost = pl.CostEstimate(
        flops=2 * M_pad * K_pad * E_pad,
        transcendentals=0,
        bytes_accessed=(n_n * M_pad * K_pad * cbytes    # patches (once per N tile)
                        + K_pad * E_pad * cbytes        # weight  (read once)
                        + E_pad * 4                     # bias
                        + M_pad * E_pad * obytes),      # output
    )

    out = pl.pallas_call(
        _patch_embed_kernel,
        out_shape=jax.ShapeDtypeStruct((M_pad, E_pad), out_dtype),
        grid_spec=pltpu.PrefetchScalarGridSpec(
            num_scalar_prefetch=0,
            grid=grid,
            in_specs=[
                # Patches stream through the double buffer.  (If xprof shows
                # exposed DMA on v5e, add pipeline_mode=pl.Buffered(3) here.)
                pl.BlockSpec((tm, K_pad), lambda j, i: (i, 0)),
                pl.BlockSpec((K_pad, tn), lambda j, i: (0, j)),   # weight: resident per N tile
                pl.BlockSpec((1, tn), lambda j, i: (0, j)),       # bias  : resident per N tile
            ],
            out_specs=pl.BlockSpec((tm, tn), lambda j, i: (i, j)),
        ),
        compiler_params=pltpu.CompilerParams(
            # All (j, i) tiles are independent -> megacore split on v7x.
            dimension_semantics=("parallel", "parallel"),
            vmem_limit_bytes=_VMEM_LIMIT,
            # Let XLA fuse the patchify/cast/pad chain into the input DMA.
            allow_input_fusion=[True, False, False],
        ),
        cost_estimate=cost,
    )(patches, w_mat, b_mat)

    if M_pad != M or E_pad != E:
        out = out[:M, :E]
    return out.reshape(B, n_patches, E)


if __name__ == "__main__":
    # Small shapes consistent with the module's forward.
    B, C, IMG, PATCH, EMBED = 2, 4, 16, 4, 32
    n_patches = (IMG // PATCH) ** 2  # 16

    key = jax.random.PRNGKey(0)
    kx, kw, kb = jax.random.split(key, 3)

    x = jax.random.normal(kx, (B, C, IMG, IMG), dtype=jnp.float32)
    # Deterministic synthetic Conv2d parameters (nn.Conv2d(C, E, P, stride=P)).
    weight = jax.random.normal(kw, (EMBED, C, PATCH, PATCH), dtype=jnp.float32) * 0.02
    bias = jax.random.normal(kb, (EMBED,), dtype=jnp.float32) * 0.02

    fn = jax.jit(functools.partial(patch_embed, patch_size=PATCH))
    out = fn(x, weight, bias)
    out = jax.block_until_ready(out)

    assert out.shape == (B, n_patches, EMBED), out.shape

    # Reference: lax conv, same semantics as PyTorch Conv2d with stride=P.
    ref = jax.lax.conv_general_dilated(
        x, weight, window_strides=(PATCH, PATCH), padding="VALID",
        dimension_numbers=("NCHW", "OIHW", "NCHW"),
    ) + bias.reshape(1, EMBED, 1, 1)
    ref = ref.reshape(B, EMBED, n_patches).transpose(0, 2, 1)

    # bf16 MXU inputs with f32 accumulation -> loosened tolerance vs f32 conv.
    assert jnp.allclose(out, ref, atol=3e-2, rtol=3e-2), \
        float(jnp.max(jnp.abs(out - ref)))

    print("KERNEL_OK")
</pallas_src>

<mosaic_0001>
module attributes {stable_mosaic.version = 11 : i64} {
  func.func @_patch_embed_kernel(%arg0: i32, %arg1: i32, %arg2: memref<32x64xbf16, #tpu.memory_space<vmem>>, %arg3: memref<64x128xbf16, #tpu.memory_space<vmem>>, %arg4: memref<1x128xf32, #tpu.memory_space<vmem>>, %arg5: memref<32x128xf32, #tpu.memory_space<vmem>>) attributes {dimension_semantics = [#tpu.dimension_semantics<parallel>, #tpu.dimension_semantics<parallel>], iteration_bounds = array<i64: 1, 1>, scalar_prefetch = 0 : i64, scratch_operands = 0 : i64, tpu.core_type = #tpu.core_type<tc>, window_params = [{transform_indices = @transform_0, window_bounds = array<i64: 32, 64>}, {transform_indices = @transform_1, window_bounds = array<i64: 64, 128>}, {transform_indices = @transform_2, window_bounds = array<i64: 1, 128>}, {transform_indices = @transform_3, window_bounds = array<i64: 32, 128>}]} {
    %c0 = arith.constant 0 : index
    %c0_0 = arith.constant 0 : index
    %0 = vector.load %arg2[%c0, %c0_0] : memref<32x64xbf16, #tpu.memory_space<vmem>>, vector<32x64xbf16>
    %c0_1 = arith.constant 0 : index
    %c0_2 = arith.constant 0 : index
    %1 = vector.load %arg3[%c0_1, %c0_2] : memref<64x128xbf16, #tpu.memory_space<vmem>>, vector<64x128xbf16>
    %cst = arith.constant dense<0.000000e+00> : vector<32x128xf32>
    %2 = tpu.matmul %0, %1, %cst {dimension_numbers = #tpu.dot_dimension_numbers<[1], [0], [0], [1], [0, 0, 1, 1], [], []>} : vector<32x64xbf16>, vector<64x128xbf16>, vector<32x128xf32> -> vector<32x128xf32>
    %c0_3 = arith.constant 0 : index
    %c0_4 = arith.constant 0 : index
    %3 = vector.load %arg4[%c0_3, %c0_4] : memref<1x128xf32, #tpu.memory_space<vmem>>, vector<1x128xf32>
    %4 = vector.broadcast %3 : vector<1x128xf32> to vector<32x128xf32>
    %5 = arith.addf %2, %4 : vector<32x128xf32>
    %c0_5 = arith.constant 0 : index
    %c0_6 = arith.constant 0 : index
    %6 = vector.load %arg5[%c0_5, %c0_6] : memref<32x128xf32, #tpu.memory_space<vmem>>, vector<32x128xf32>
    tpu.vector_store %arg5[%c0_5, %c0_6], %5 {strides = array<i32>} : memref<32x128xf32, #tpu.memory_space<vmem>>, vector<32x128xf32>,
    return
  }
  func.func @transform_0(%arg0: i32, %arg1: i32) -> (i32, i32) {
    %c0_i32 = arith.constant 0 : i32
    %c0_i32_0 = arith.constant 0 : i32
    return %arg1, %c0_i32 : i32, i32
  }
  func.func @transform_1(%arg0: i32, %arg1: i32) -> (i32, i32) {
    %c0_i32 = arith.constant 0 : i32
    %c0_i32_0 = arith.constant 0 : i32
    return %c0_i32, %arg0 : i32, i32
  }
  func.func @transform_2(%arg0: i32, %arg1: i32) -> (i32, i32) {
    %c0_i32 = arith.constant 0 : i32
    %c0_i32_0 = arith.constant 0 : i32
    return %c0_i32, %arg0 : i32, i32
  }
  func.func @transform_3(%arg0: i32, %arg1: i32) -> (i32, i32) {
    %c0_i32 = arith.constant 0 : i32
    return %arg1, %arg0 : i32, i32
  }
}

</mosaic_0001>

<llo_original>
// kernel: patch_embed.1
$region0: #{patch_embed.1}
  #allocation0 [shape = 'u32[]', space=smem, size = 0x4, offset = 0x4, fixed_abs, tag = 'smem constant byte address 0x4 - core index']
  #allocation1 [shape = 'u32[144,128]{1,0:T(1,128)}', space=vmem, size = 0x12000, scoped, tag = 'internal scratch']
  %s0 = inlined_call_operand.vmem [shape: bf16[32,64], index: 0, kind: input, shape index: {}]
  %s1 = inlined_call_operand.vmem [shape: bf16[64,128], index: 1, kind: input, shape index: {}]
  %s2 = inlined_call_operand.vmem [shape: f32[1,128], index: 2, kind: input, shape index: {}]
  %s3 = inlined_call_operand.hbm [shape: f32[32,128], index: 3, kind: output, shape index: {}]
  %s4 = sld [smem:[#allocation0]]
  $region22: #{patch_embed.1} parent=0
    _
  %s6 = ssub.s32 1, %s4
  %s7 = scalar_select 0, %s6, %s4
  $region1: #{patch_embed.1} parent=0
    #allocation2 [shape = 'u8[16384]{0}', space=vmem, size = 0x4000, scoped, tag = 'output window, operand 0, single buffered']
    #allocation3 [shape = 's32[1]{0}', space=sflag, size = 0x4, scoped, tag = 'scoped memory for patch_embed.1']
    %8 = vsyncpa [#allocation3], 0
    // Predicated region
    $region2: #{patch_embed.1} parent=1 // pred_check
      _
    $region3: #{patch_embed.1} parent=1 // pred_check_branch
      %10 = sbr.rel (0) target = $region5
    $region4: #{patch_embed.1} parent=1 // pred_region
      _
    $region5: #{patch_embed.1} parent=1 // pred_fallthru
      _
    // Predicated region
    $region6: #{patch_embed.1} parent=1 // pred_check
      _
    $region7: #{patch_embed.1} parent=1 // pred_check_branch
      %12 = sbr.rel (0) target = $region9
    $region8: #{patch_embed.1} parent=1 // pred_region
      _
    $region9: #{patch_embed.1} parent=1 // pred_fallthru
      _
    // Predicated region
    $region10: #{patch_embed.1} parent=1 // pred_check
      _
    $region11: #{patch_embed.1} parent=1 // pred_check_branch
      %14 = sbr.rel (0) target = $region13
    $region12: #{patch_embed.1} parent=1 // pred_region
      _
    $region13: #{patch_embed.1} parent=1 // pred_fallthru
      _
    %v16 = vld [vmem:[%s0] sm:$0xf]
    %v17 = vld [vmem:[%s0 + $0x4] sm:$0xf]
    %v18 = vld [vmem:[%s0 + $0x8] sm:$0xf]
    %v19 = vld [vmem:[%s0 + $0xc] sm:$0xf]
    %v20 = vld [vmem:[%s1] sm:$0xf]
    %v21 = vld [vmem:[%s1 + $0x4] sm:$0xf]
    %v22 = vld [vmem:[%s1 + $0x8] sm:$0xf]
    %v23 = vld [vmem:[%s1 + $0xc] sm:$0xf]
    %v24 = vld [vmem:[%s1 + $0x10] sm:$0xf]
    %v25 = vld [vmem:[%s1 + $0x14] sm:$0xf]
    %v26 = vld [vmem:[%s1 + $0x18] sm:$0xf]
    %v27 = vld [vmem:[%s1 + $0x1c] sm:$0xf]
    %v28 = vld [vmem:[%s2] sm:$0x1]
    %v30 = vlaneseq
    %v31 = vshrl.u32 %v30, 7
    %v32 = vsub.s32 0, %v31
    %v33 = vrot.slane %v28, %v32
    %v39 = vunpack.c.l.b16 %v16
    %v40 = vunpack.c.l.b16 %v17
    %v41 = vunpack.c.l.b16 %v18
    %v42 = vunpack.c.l.b16 %v19
    %v43 = vpack.c.b16 %v40, %v39
    %v44 = vpack.c.b16 %v42, %v41
    %v53 = vunpack.c.l.b16 %v20
    %v54 = vunpack.c.l.b16 %v21
    %v55 = vunpack.c.l.b16 %v22
    %v56 = vunpack.c.l.b16 %v23
    %v57 = vunpack.c.l.b16 %v24
    %v58 = vunpack.c.l.b16 %v25
    %v59 = vunpack.c.l.b16 %v26
    %v60 = vunpack.c.l.b16 %v27
    %v61 = vpack.c.b16 %v54, %v53
    %v62 = vpack.c.b16 %v56, %v55
    %v63 = vpack.c.b16 %v58, %v57
    %v64 = vpack.c.b16 %v60, %v59
    %vm69 = vcmask 523264
    %v71 = vsel %vm69, %v43, 0
    %v74 = vsel %vm69, %v44, 0
    %76 = vmatprep.subr.bf16.mxu0 0
    %77 = vmatpush1.bf16.msra.mxu0 %v61
    %78 = vmatprep.subr.bf16.mxu0 0
    %79 = vmatpush1.bf16.msra.mxu0 %v62
    %80 = vmatprep.subr.bf16.mxu0 0
    %81 = vmatpush1.bf16.msra.mxu0 %v63
    %82 = vmatprep.subr.bf16.mxu0 0
    %83 = vmatpush1.bf16.msra.mxu0 %v64
    %84 = vmatprep.subr.bf16.mxu0 0
    %85 = vmatpush1.bf16.msra.mxu0 0
    %86 = vmatprep.subr.bf16.mxu0 0
    %87 = vmatpush1.bf16.msra.mxu0 0
    %88 = vmatprep.subr.bf16.mxu0 0
    %89 = vmatpush1.bf16.msra.mxu0 0
    %90 = vmatprep.subr.bf16.mxu0 0
    %91 = vmatpush1.bf16.msra.mxu0 0
    %92 = vmatprep.subr.bf16.mxu0 0
    %93 = vmatpush1.bf16.msra.mxu0 0
    %94 = vmatprep.subr.bf16.mxu0 0
    %95 = vmatpush1.bf16.msra.mxu0 0
    %96 = vmatprep.subr.bf16.mxu0 0
    %97 = vmatpush1.bf16.msra.mxu0 0
    %98 = vmatprep.subr.bf16.mxu0 0
    %99 = vmatpush1.bf16.msra.mxu0 0
    %100 = vmatprep.subr.bf16.mxu0 0
    %101 = vmatpush1.bf16.msra.mxu0 0
    %102 = vmatprep.subr.bf16.mxu0 0
    %103 = vmatpush1.bf16.msra.mxu0 0
    %104 = vmatprep.subr.bf16.mxu0 0
    %105 = vmatpush1.bf16.msra.mxu0 0
    %106 = vmatprep.subr.bf16.mxu0 0
    %107 = vmatpush1.bf16.msra.mxu0 0
    %108 = vmatprep.mubr.bf16.mxu0 0
    %109 = vmatmul.mubr.bf16.gmra.mrb[0].mxu0 %v71
    %v110 = vpop.f32.mrb[0].mxu0
    %v111 = vadd.f32 %v33, %v110
    %v112 = vpop.f32.mrb[0].mxu0
    %v113 = vpop.f32.mrb[0].mxu0
    %v114 = vadd.f32 %v33, %v113
    %v115 = vpop.f32.mrb[0].mxu0
    %116 = vmatprep.mubr.bf16.mxu0 0
    %117 = vmatmul.mubr.bf16.gmra.mrb[0].mxu0 %v74
    %v118 = vpop.f32.mrb[0].mxu0
    %v119 = vadd.f32 %v33, %v118
    %v120 = vpop.f32.mrb[0].mxu0
    %v121 = vpop.f32.mrb[0].mxu0
    %v122 = vadd.f32 %v33, %v121
    %v123 = vpop.f32.mrb[0].mxu0
    %124 = vdwg.mxu0
    %125 = vst [vmem:[#allocation2] sm:$0xff] %v111
    %126 = vst [vmem:[#allocation2 + $0x8] sm:$0xff] %v114
    %127 = vst [vmem:[#allocation2 + $0x10] sm:$0xff] %v119
    %128 = vst [vmem:[#allocation2 + $0x18] sm:$0xff] %v122
    // Predicated region
    $region14: #{patch_embed.1} parent=1 // pred_check
      _
    $region15: #{patch_embed.1} parent=1 // pred_check_branch
      %130 = sbr.rel (0) target = $region17
    $region16: #{patch_embed.1} parent=1 // pred_region
      %s132 = ssub.s32 512, 512
      %133 = vsyncadd [#allocation3], %s132
      %s134 = sshll.u32 [#allocation2], 4
      %s135 = int_to_ptr.vmem [resolvable:$true] %s134
      %140 = dma.vmem_to_hbm [thread:$0]  %s135, 512, %s3, [#allocation3], 128, 128, 8
    $region17: #{patch_embed.1} parent=1 // pred_fallthru
      _
    // Predicated region
    $region18: #{patch_embed.1} parent=1 // pred_check
      _
    $region19: #{patch_embed.1} parent=1 // pred_check_branch
      %142 = sbr.rel (0) target = $region21
    $region20: #{patch_embed.1} parent=1 // pred_region
      %143 = dma.done [#allocation3], 512
    $region21: #{patch_embed.1} parent=1 // pred_fallthru
      _
    %144 = vsyncpa [#allocation3], 1

</llo_original>
